<compile_context>
chip_gen: v5e
topology: v5e:2x2
jax: 0.10.0
libtpu: 0.0.40
codegen_flags: <defaults>
</compile_context>

<pallas_src>
import jax
import jax.numpy as jnp
from jax.experimental import pallas as pl
from jax.experimental.pallas import tpu as pltpu


_SELECT_MAX_VOCAB = 16  # exact unrolled-select path up to this vocab size; MXU one-hot above


def _select_kernel(tok_ref, tab_ref, out_ref):
    """Exact select-accumulate lookup for tiny vocabularies.

    tok_ref: (tn, m)   int32 -- token ids for all m metadata keys (this n-tile)
    tab_ref: (V, m*d)  f32   -- lane-dense stacked tables: key j lives in lanes [j*d,(j+1)*d)
    out_ref: (tn, m*d) f32   -- concatenated per-key embeddings (single lane-dense store)
    """
    tn, m = tok_ref.shape
    V, md = tab_ref.shape
    d = md // m

    ids_all = tok_ref[...]                                     # (tn, m)

    # Hoisted ONCE per tile: lane-dense id broadcast -- lane l carries the token of key
    # l // d.  (JAX does not CSE broadcast_in_dim, so this must not live in the vocab loop.)
    lane = jax.lax.broadcasted_iota(jnp.int32, (tn, md), 1)
    ids_b = jnp.zeros((tn, md), jnp.int32)
    for j in range(m):                                         # m is tiny -> static unroll
        in_key_j = (lane >= j * d) & (lane < (j + 1) * d)
        ids_b = jnp.where(in_key_j, ids_all[:, j:j + 1], ids_b)

    # Exact gather as a pure select chain over the (tiny) vocab: one full-width compare +
    # select per vocab entry over a single (tn, m*d) accumulator.  Select (not add)
    # reproduces table rows bit-exactly, including -0.0.
    # TODO(synk): nn.Embedding raises on out-of-range ids; here they silently yield zero rows.
    acc = jnp.zeros((tn, md), tab_ref.dtype)
    for v in range(V):                                         # V <= 16 -> static unroll
        row = tab_ref[v:v + 1, :]                              # (1, m*d)
        # NOTE: a stride-0 sublane-broadcast load (pl.ds(v, tn, stride=0)) would move this
        # broadcast onto the vld slots, but pl.Slice requires stride >= 1, so the select
        # broadcasts the row instead (V is tiny, so this is a minor cost).
        acc = jnp.where(ids_b == v, row, acc)
    out_ref[...] = acc.astype(out_ref.dtype)


def _onehot_matmul_kernel(tok_ref, tab_ref, out_ref):
    """O(1)-per-element lookup for larger vocabularies via a one-hot MXU matmul.

    tok_ref: (tn, m)      int32
    tab_ref: (m*V, m*d)   f32 -- block-diagonal: rows [j*V,(j+1)*V) x lanes [j*d,(j+1)*d) = table j
    out_ref: (tn, m*d)    f32
    """
    tn, m = tok_ref.shape
    mV, md = tab_ref.shape
    V = mV // m

    ids_all = tok_ref[...]                                     # (tn, m)
    kk = jax.lax.broadcasted_iota(jnp.int32, (tn, mV), 1)
    ids_kb = jnp.zeros((tn, mV), jnp.int32)
    v_of = jnp.zeros((tn, mV), jnp.int32)
    for j in range(m):                                         # m tiny -> static unroll (once per tile)
        in_key_j = (kk >= j * V) & (kk < (j + 1) * V)
        ids_kb = jnp.where(in_key_j, ids_all[:, j:j + 1], ids_kb)
        v_of = jnp.where(in_key_j, kk - j * V, v_of)
    onehot = (ids_kb == v_of).astype(tab_ref.dtype)            # (tn, m*V): one 1.0 per key block
    # MXU gather against the VMEM-resident block-diagonal table.  Bit-exactness is
    # intentionally relaxed on this path (f32 MXU matmul precision).
    out_ref[...] = jnp.dot(onehot, tab_ref[...],
                           preferred_element_type=jnp.float32).astype(out_ref.dtype)


def _choose_tiling(n: int, row_bytes: int, vmem_budget: int = 16 << 20) -> tuple[int, int]:
    """Pick the n-tile size and padded n.

    Prefers the largest tile that (a) keeps the grid length >= 2 so the "parallel" axis
    can be sharded across TensorCores (v7x megacore) and the pipeliner has a prefetch
    step, and (b) keeps the double-buffered per-tile footprint within `vmem_budget`.
    n is padded up to a multiple of the tile (never taken as one giant block).
    """
    tn = 128
    for cand in (4096, 2048, 1024, 512, 256, 128):
        if n >= 2 * cand and 2 * cand * row_bytes <= vmem_budget:
            tn = cand
            break
    n_pad = -(-n // tn) * tn
    return tn, n_pad


def metadata_embedding(metadata_tokens_n: dict[str, jax.Array],
                       tables: dict[str, jax.Array],
                       *,
                       out_dtype=None) -> jax.Array:
    """Pallas forward of MetadataEmbedding.

    metadata_tokens_n: dict of (n,) integer token arrays (one per metadata key).
    tables:            dict of (vocab_k, d) embedding tables (same keys).
    Returns the (n, m, d) stacked embeddings, keys in metadata_tokens_n iteration order
    (matching torch.stack([...], dim=1)).  Optional `out_dtype` (e.g. bf16) halves the
    output HBM traffic; compute stays in the table dtype and only the store is cast.
    """
    keys = list(metadata_tokens_n.keys())
    m = len(keys)
    n = int(metadata_tokens_n[keys[0]].shape[0])
    d = int(tables[keys[0]].shape[1])
    V = max(int(tables[k].shape[0]) for k in keys)
    tab_dtype = tables[keys[0]].dtype
    out_dtype = tab_dtype if out_dtype is None else out_dtype
    md = m * d

    # Pack tokens -> (n, m) int32 (sublane-major rows per cell).
    tokens_nm = jnp.stack([metadata_tokens_n[k].astype(jnp.int32) for k in keys], axis=1)

    if V <= _SELECT_MAX_VOCAB:
        # Lane-dense stacked tables (V, m*d): one-time relayout of a tiny array in XLA.
        tab = jnp.zeros((V, md), tab_dtype)
        for j, k in enumerate(keys):
            vk = int(tables[k].shape[0])
            tab = tab.at[:vk, j * d:(j + 1) * d].set(tables[k].astype(tab_dtype))
        kernel = _select_kernel
    else:
        # Block-diagonal table (m*V, m*d) for the one-hot MXU path.
        tab = jnp.zeros((m * V, md), tab_dtype)
        for j, k in enumerate(keys):
            vk = int(tables[k].shape[0])
            tab = tab.at[j * V:j * V + vk, j * d:(j + 1) * d].set(tables[k].astype(tab_dtype))
        kernel = _onehot_matmul_kernel

    # Tile the batch axis; pad n up to a multiple of the tile (padded rows use id 0 and
    # are sliced off afterwards).
    row_bytes = (md + m) * 4
    tn, n_pad = _choose_tiling(n, row_bytes)
    if n_pad != n:
        tokens_nm = jnp.pad(tokens_nm, ((0, n_pad - n), (0, 0)))

    out_flat = pl.pallas_call(
        kernel,
        out_shape=jax.ShapeDtypeStruct((n_pad, md), out_dtype),
        grid=(n_pad // tn,),
        in_specs=[
            pl.BlockSpec((tn, m), lambda i: (i, 0)),       # tokens: per n-tile
            pl.BlockSpec(tab.shape, lambda i: (0, 0)),     # table: constant block -> VMEM-resident
        ],
        # NOTE: m*d (= 96 here) is not a multiple of 128, so output stores are masked
        # (vst.msk).  Padding the feature dim would break the (n, m, d) output contract,
        # so we accept the 25% store-lane waste.
        out_specs=pl.BlockSpec((tn, md), lambda i: (i, 0)),
        compiler_params=pltpu.CompilerParams(
            dimension_semantics=("parallel",),
            vmem_limit_bytes=32 * 1024 * 1024,
        ),
    )(tokens_nm, tab)

    if n_pad != n:
        out_flat = out_flat[:n]
    # (n, m*d) -> (n, m, d): metadata-only reshape (no HBM transpose epilogue).
    return out_flat.reshape(n, m, d)


if __name__ == "__main__":
    key = jax.random.PRNGKey(0)

    # ---- Case 1: tiny vocabs -> exact select path (bit-exact vs. reference) ------------
    categorical_vocab_sizes = {"assay": 6, "suspension_type": 4, "donor_id": 10}
    d_model = 32
    n = 256

    tables = {}
    tokens = {}
    for k, vocab in categorical_vocab_sizes.items():
        key, k1, k2 = jax.random.split(key, 3)
        tables[k] = jax.random.normal(k1, (vocab, d_model), dtype=jnp.float32)
        tokens[k] = jax.random.randint(k2, (n,), 0, vocab, dtype=jnp.int32)

    out = metadata_embedding(tokens, tables)
    out = jax.block_until_ready(out)

    ref = jnp.stack([tables[k][tokens[k]] for k in categorical_vocab_sizes], axis=1)
    assert out.shape == (n, len(categorical_vocab_sizes), d_model), out.shape
    assert out.dtype == jnp.float32
    assert bool(jnp.array_equal(out, ref)), "select path mismatch"

    # ---- Case 2: larger vocabs + ragged n -> one-hot MXU path + padded tail ------------
    vocab_sizes2 = {"cell_type": 40, "tissue": 25}
    n2 = 200  # not a multiple of 128 -> exercises the padding/tail path
    tables2 = {}
    tokens2 = {}
    for k, vocab in vocab_sizes2.items():
        key, k1, k2 = jax.random.split(key, 3)
        tables2[k] = jax.random.normal(k1, (vocab, d_model), dtype=jnp.float32)
        tokens2[k] = jax.random.randint(k2, (n2,), 0, vocab, dtype=jnp.int32)

    out2 = metadata_embedding(tokens2, tables2)
    out2 = jax.block_until_ready(out2)
    ref2 = jnp.stack([tables2[k][tokens2[k]] for k in vocab_sizes2], axis=1)
    assert out2.shape == (n2, len(vocab_sizes2), d_model), out2.shape
    # The MXU one-hot gather relaxes bit-exactness (f32 matmul precision) -> tolerance check.
    assert bool(jnp.allclose(out2, ref2, rtol=1e-2, atol=1e-3)), "one-hot path mismatch"

    print("KERNEL_OK")
</pallas_src>

<mosaic_0001>
module attributes {stable_mosaic.version = 11 : i64} {
  func.func @_select_kernel(%arg0: i32, %arg1: memref<128x3xi32, #tpu.memory_space<vmem>>, %arg2: memref<10x96xf32, #tpu.memory_space<vmem>>, %arg3: memref<128x96xf32, #tpu.memory_space<vmem>>) attributes {dimension_semantics = [#tpu.dimension_semantics<parallel>], iteration_bounds = array<i64: 2>, scalar_prefetch = 0 : i64, scratch_operands = 0 : i64, tpu.core_type = #tpu.core_type<tc>, window_params = [{transform_indices = @transform_0, window_bounds = array<i64: 128, 3>}, {pipeline_mode = #tpu.pipeline_mode<synchronous>, transform_indices = @transform_1, window_bounds = array<i64: 10, 96>}, {transform_indices = @transform_2, window_bounds = array<i64: 128, 96>}]} {
    %c0 = arith.constant 0 : index
    %c0_0 = arith.constant 0 : index
    %0 = vector.load %arg1[%c0, %c0_0] : memref<128x3xi32, #tpu.memory_space<vmem>>, vector<128x3xi32>
    %1 = tpu.iota {dimensions = array<i32: 1>} : vector<128x96xi32>
    %c0_i32 = arith.constant 0 : i32
    %2 = vector.broadcast %c0_i32 : i32 to vector<128x96xi32>
    %c0_i32_1 = arith.constant 0 : i32
    %3 = vector.broadcast %c0_i32_1 : i32 to vector<128x96xi32>
    %4 = arith.cmpi sge, %1, %3 : vector<128x96xi32>
    %c32_i32 = arith.constant 32 : i32
    %5 = vector.broadcast %c32_i32 : i32 to vector<128x96xi32>
    %6 = arith.cmpi slt, %1, %5 : vector<128x96xi32>
    %7 = arith.andi %4, %6 : vector<128x96xi1>
    %8 = vector.extract_strided_slice %0 {offsets = [0, 0], sizes = [128, 1], strides = [1, 1]} : vector<128x3xi32> to vector<128x1xi32>
    %9 = vector.shape_cast %8 : vector<128x1xi32> to vector<128x1xi32>
    %10 = vector.broadcast %9 : vector<128x1xi32> to vector<128x96xi32>
    %11 = arith.select %7, %10, %2 : vector<128x96xi1>, vector<128x96xi32>
    %c32_i32_2 = arith.constant 32 : i32
    %12 = vector.broadcast %c32_i32_2 : i32 to vector<128x96xi32>
    %13 = arith.cmpi sge, %1, %12 : vector<128x96xi32>
    %c64_i32 = arith.constant 64 : i32
    %14 = vector.broadcast %c64_i32 : i32 to vector<128x96xi32>
    %15 = arith.cmpi slt, %1, %14 : vector<128x96xi32>
    %16 = arith.andi %13, %15 : vector<128x96xi1>
    %17 = vector.extract_strided_slice %0 {offsets = [0, 1], sizes = [128, 1], strides = [1, 1]} : vector<128x3xi32> to vector<128x1xi32>
    %18 = vector.shape_cast %17 : vector<128x1xi32> to vector<128x1xi32>
    %19 = vector.broadcast %18 : vector<128x1xi32> to vector<128x96xi32>
    %20 = arith.select %16, %19, %11 : vector<128x96xi1>, vector<128x96xi32>
    %c64_i32_3 = arith.constant 64 : i32
    %21 = vector.broadcast %c64_i32_3 : i32 to vector<128x96xi32>
    %22 = arith.cmpi sge, %1, %21 : vector<128x96xi32>
    %c96_i32 = arith.constant 96 : i32
    %23 = vector.broadcast %c96_i32 : i32 to vector<128x96xi32>
    %24 = arith.cmpi slt, %1, %23 : vector<128x96xi32>
    %25 = arith.andi %22, %24 : vector<128x96xi1>
    %26 = vector.extract_strided_slice %0 {offsets = [0, 2], sizes = [128, 1], strides = [1, 1]} : vector<128x3xi32> to vector<128x1xi32>
    %27 = vector.shape_cast %26 : vector<128x1xi32> to vector<128x1xi32>
    %28 = vector.broadcast %27 : vector<128x1xi32> to vector<128x96xi32>
    %29 = arith.select %25, %28, %20 : vector<128x96xi1>, vector<128x96xi32>
    %cst = arith.constant 0.000000e+00 : f32
    %30 = vector.broadcast %cst : f32 to vector<128x96xf32>
    %c0_4 = arith.constant 0 : index
    %c0_5 = arith.constant 0 : index
    %31 = vector.load %arg2[%c0_4, %c0_5] : memref<10x96xf32, #tpu.memory_space<vmem>>, vector<1x96xf32>
    %c0_i32_6 = arith.constant 0 : i32
    %32 = vector.broadcast %c0_i32_6 : i32 to vector<128x96xi32>
    %33 = arith.cmpi eq, %29, %32 : vector<128x96xi32>
    %34 = vector.shape_cast %31 : vector<1x96xf32> to vector<1x96xf32>
    %35 = vector.broadcast %34 : vector<1x96xf32> to vector<128x96xf32>
    %36 = arith.select %33, %35, %30 : vector<128x96xi1>, vector<128x96xf32>
    %c1 = arith.constant 1 : index
    %c0_7 = arith.constant 0 : index
    %37 = vector.load %arg2[%c1, %c0_7] : memref<10x96xf32, #tpu.memory_space<vmem>>, vector<1x96xf32>
    %c1_i32 = arith.constant 1 : i32
    %38 = vector.broadcast %c1_i32 : i32 to vector<128x96xi32>
    %39 = arith.cmpi eq, %29, %38 : vector<128x96xi32>
    %40 = vector.shape_cast %37 : vector<1x96xf32> to vector<1x96xf32>
    %41 = vector.broadcast %40 : vector<1x96xf32> to vector<128x96xf32>
    %42 = arith.select %39, %41, %36 : vector<128x96xi1>, vector<128x96xf32>
    %c2 = arith.constant 2 : index
    %c0_8 = arith.constant 0 : index
    %43 = vector.load %arg2[%c2, %c0_8] : memref<10x96xf32, #tpu.memory_space<vmem>>, vector<1x96xf32>
    %c2_i32 = arith.constant 2 : i32
    %44 = vector.broadcast %c2_i32 : i32 to vector<128x96xi32>
    %45 = arith.cmpi eq, %29, %44 : vector<128x96xi32>
    %46 = vector.shape_cast %43 : vector<1x96xf32> to vector<1x96xf32>
    %47 = vector.broadcast %46 : vector<1x96xf32> to vector<128x96xf32>
    %48 = arith.select %45, %47, %42 : vector<128x96xi1>, vector<128x96xf32>
    %c3 = arith.constant 3 : index
    %c0_9 = arith.constant 0 : index
    %49 = vector.load %arg2[%c3, %c0_9] : memref<10x96xf32, #tpu.memory_space<vmem>>, vector<1x96xf32>
    %c3_i32 = arith.constant 3 : i32
    %50 = vector.broadcast %c3_i32 : i32 to vector<128x96xi32>
    %51 = arith.cmpi eq, %29, %50 : vector<128x96xi32>
    %52 = vector.shape_cast %49 : vector<1x96xf32> to vector<1x96xf32>
    %53 = vector.broadcast %52 : vector<1x96xf32> to vector<128x96xf32>
    %54 = arith.select %51, %53, %48 : vector<128x96xi1>, vector<128x96xf32>
    %c4 = arith.constant 4 : index
    %c0_10 = arith.constant 0 : index
    %55 = vector.load %arg2[%c4, %c0_10] : memref<10x96xf32, #tpu.memory_space<vmem>>, vector<1x96xf32>
    %c4_i32 = arith.constant 4 : i32
    %56 = vector.broadcast %c4_i32 : i32 to vector<128x96xi32>
    %57 = arith.cmpi eq, %29, %56 : vector<128x96xi32>
    %58 = vector.shape_cast %55 : vector<1x96xf32> to vector<1x96xf32>
    %59 = vector.broadcast %58 : vector<1x96xf32> to vector<128x96xf32>
    %60 = arith.select %57, %59, %54 : vector<128x96xi1>, vector<128x96xf32>
    %c5 = arith.constant 5 : index
    %c0_11 = arith.constant 0 : index
    %61 = vector.load %arg2[%c5, %c0_11] : memref<10x96xf32, #tpu.memory_space<vmem>>, vector<1x96xf32>
    %c5_i32 = arith.constant 5 : i32
    %62 = vector.broadcast %c5_i32 : i32 to vector<128x96xi32>
    %63 = arith.cmpi eq, %29, %62 : vector<128x96xi32>
    %64 = vector.shape_cast %61 : vector<1x96xf32> to vector<1x96xf32>
    %65 = vector.broadcast %64 : vector<1x96xf32> to vector<128x96xf32>
    %66 = arith.select %63, %65, %60 : vector<128x96xi1>, vector<128x96xf32>
    %c6 = arith.constant 6 : index
    %c0_12 = arith.constant 0 : index
    %67 = vector.load %arg2[%c6, %c0_12] : memref<10x96xf32, #tpu.memory_space<vmem>>, vector<1x96xf32>
    %c6_i32 = arith.constant 6 : i32
    %68 = vector.broadcast %c6_i32 : i32 to vector<128x96xi32>
    %69 = arith.cmpi eq, %29, %68 : vector<128x96xi32>
    %70 = vector.shape_cast %67 : vector<1x96xf32> to vector<1x96xf32>
    %71 = vector.broadcast %70 : vector<1x96xf32> to vector<128x96xf32>
    %72 = arith.select %69, %71, %66 : vector<128x96xi1>, vector<128x96xf32>
    %c7 = arith.constant 7 : index
    %c0_13 = arith.constant 0 : index
    %73 = vector.load %arg2[%c7, %c0_13] : memref<10x96xf32, #tpu.memory_space<vmem>>, vector<1x96xf32>
    %c7_i32 = arith.constant 7 : i32
    %74 = vector.broadcast %c7_i32 : i32 to vector<128x96xi32>
    %75 = arith.cmpi eq, %29, %74 : vector<128x96xi32>
    %76 = vector.shape_cast %73 : vector<1x96xf32> to vector<1x96xf32>
    %77 = vector.broadcast %76 : vector<1x96xf32> to vector<128x96xf32>
    %78 = arith.select %75, %77, %72 : vector<128x96xi1>, vector<128x96xf32>
    %c8 = arith.constant 8 : index
    %c0_14 = arith.constant 0 : index
    %79 = vector.load %arg2[%c8, %c0_14] : memref<10x96xf32, #tpu.memory_space<vmem>>, vector<1x96xf32>
    %c8_i32 = arith.constant 8 : i32
    %80 = vector.broadcast %c8_i32 : i32 to vector<128x96xi32>
    %81 = arith.cmpi eq, %29, %80 : vector<128x96xi32>
    %82 = vector.shape_cast %79 : vector<1x96xf32> to vector<1x96xf32>
    %83 = vector.broadcast %82 : vector<1x96xf32> to vector<128x96xf32>
    %84 = arith.select %81, %83, %78 : vector<128x96xi1>, vector<128x96xf32>
    %c9 = arith.constant 9 : index
    %c0_15 = arith.constant 0 : index
    %85 = vector.load %arg2[%c9, %c0_15] : memref<10x96xf32, #tpu.memory_space<vmem>>, vector<1x96xf32>
    %c9_i32 = arith.constant 9 : i32
    %86 = vector.broadcast %c9_i32 : i32 to vector<128x96xi32>
    %87 = arith.cmpi eq, %29, %86 : vector<128x96xi32>
    %88 = vector.shape_cast %85 : vector<1x96xf32> to vector<1x96xf32>
    %89 = vector.broadcast %88 : vector<1x96xf32> to vector<128x96xf32>
    %90 = arith.select %87, %89, %84 : vector<128x96xi1>, vector<128x96xf32>
    %c0_16 = arith.constant 0 : index
    %c0_17 = arith.constant 0 : index
    %91 = vector.load %arg3[%c0_16, %c0_17] : memref<128x96xf32, #tpu.memory_space<vmem>>, vector<128x96xf32>
    tpu.vector_store %arg3[%c0_16, %c0_17], %90 {strides = array<i32>} : memref<128x96xf32, #tpu.memory_space<vmem>>, vector<128x96xf32>,
    return
  }
  func.func @transform_0(%arg0: i32) -> (i32, i32) {
    %c0_i32 = arith.constant 0 : i32
    %c0_i32_0 = arith.constant 0 : i32
    return %arg0, %c0_i32 : i32, i32
  }
  func.func @transform_1(%arg0: i32) -> (i32, i32) {
    %c0_i32 = arith.constant 0 : i32
    %c0_i32_0 = arith.constant 0 : i32
    %c0_i32_1 = arith.constant 0 : i32
    return %c0_i32, %c0_i32_0 : i32, i32
  }
  func.func @transform_2(%arg0: i32) -> (i32, i32) {
    %c0_i32 = arith.constant 0 : i32
    %c0_i32_0 = arith.constant 0 : i32
    return %arg0, %c0_i32 : i32, i32
  }
}

</mosaic_0001>

<llo_original>
// kernel: tpu_custom_call.1
$region0: #{tpu_custom_call.1}
  #allocation0 [shape = 'u32[]', space=smem, size = 0x4, offset = 0x4, fixed_abs, tag = 'smem constant byte address 0x4 - core index']
  #allocation1 [shape = 'u32[72,128]{1,0:T(1,128)}', space=vmem, size = 0x9000, scoped, tag = 'internal scratch']
  %s0 = inlined_call_operand.vmem [shape: s32[256,3], index: 0, kind: input, shape index: {}]
  %s1 = inlined_call_operand.vmem [shape: f32[10,96], index: 1, kind: input, shape index: {}]
  %s2 = inlined_call_operand.vmem [shape: f32[256,96], index: 2, kind: output, shape index: {}]
  %s3 = sld [smem:[#allocation0]]
  $region41: #{tpu_custom_call.1} parent=0
    _
  %s5 = ssub.s32 1, %s3
  %s6 = scalar_select 0, %s5, %s3
  loop: start=0, step=1, limit=4
  $region2: #{tpu_custom_call.1} parent=0 // loop_pre_header
    _
  $region3: #{tpu_custom_call.1} parent=0 // loop_header
    %s8 = sphi 0, %s12
    %p9 = scmp.ge.s32.totalorder %s8, 4
    %s18 = sphi 0, %s20
    %s21 = sphi 0, %s18
    %s22 = sphi 0, %s21
    %s38 = sphi 0, %s22
    %s42 = sphi 0, %s42
    %s44 = sphi 0, %s42
    %s45 = sphi 0, %s44
    %s59 = sphi 0, %s45
    %s65 = sphi 0, %s67
    %s68 = sphi 0, %s65
    %s69 = sphi 0, %s68
    %s85 = sphi 0, %s69
  $region4: #{tpu_custom_call.1} parent=0 // loop_header_branch
    %11 = sbr.rel (%p9) target = $region8
  $region5: #{tpu_custom_call.1} parent=0 // loop_body
    %s13 = ssub.s32 %s8, 1
    %s14 = ssub.s32 %s8, 2
    %s15 = sadd.s32 %s8, 1
    %s16 = ssub.s32 %s8, %s15
    %p17 = scmp.eq.s32.totalorder %s16, 0
    %s19 = sadd.s32 %s18, 1
    %s20 = scalar_select %p17, %s18, %s19
    %p23 = pneg %p17
    %p24 = scmp.eq.s32.totalorder %s8, 1
    %p25 = por %p23, %p24
    %p26 = scmp.ne.s32.totalorder %s18, %s21
    %p27 = scmp.eq.s32.totalorder %s8, 0
    %p28 = por %p26, %p27
    %p29 = scmp.ne.s32.totalorder %s18, %s21
    %p30 = scmp.eq.s32.totalorder %s13, 1
    %p31 = por %p29, %p30
    %p32 = scmp.ne.s32.totalorder %s21, %s22
    %p33 = scmp.eq.s32.totalorder %s13, 0
    %p34 = por %p32, %p33
    %p35 = scmp.ne.s32.totalorder %s21, %s22
    %p36 = scmp.eq.s32.totalorder %s14, 1
    %p37 = por %p35, %p36
    %p39 = scmp.ne.s32.totalorder %s22, %s38
    %p40 = scmp.eq.s32.totalorder %s14, 0
    %p41 = por %p39, %p40
    %s43 = sadd.s32 %s42, 1
    %p46 = scmp.eq.s32.totalorder %s8, 1
    %p47 = scmp.ne.s32.totalorder %s42, %s44
    %p48 = scmp.eq.s32.totalorder %s8, 0
    %p49 = por %p47, %p48
    %p50 = scmp.ne.s32.totalorder %s42, %s44
    %p51 = scmp.eq.s32.totalorder %s13, 1
    %p52 = por %p50, %p51
    %p53 = scmp.ne.s32.totalorder %s44, %s45
    %p54 = scmp.eq.s32.totalorder %s13, 0
    %p55 = por %p53, %p54
    %p56 = scmp.ne.s32.totalorder %s44, %s45
    %p57 = scmp.eq.s32.totalorder %s14, 1
    %p58 = por %p56, %p57
    %p60 = scmp.ne.s32.totalorder %s45, %s59
    %p61 = scmp.eq.s32.totalorder %s14, 0
    %p62 = por %p60, %p61
    %s63 = ssub.s32 %s8, %s15
    %p64 = scmp.eq.s32.totalorder %s63, 0
    %s66 = sadd.s32 %s65, 1
    %s67 = scalar_select %p64, %s65, %s66
    %p70 = pneg %p64
    %p71 = scmp.eq.s32.totalorder %s8, 1
    %p72 = por %p70, %p71
    %p73 = scmp.ne.s32.totalorder %s65, %s68
    %p74 = scmp.eq.s32.totalorder %s8, 0
    %p75 = por %p73, %p74
    %p76 = scmp.ne.s32.totalorder %s65, %s68
    %p77 = scmp.eq.s32.totalorder %s13, 1
    %p78 = por %p76, %p77
    %p79 = scmp.ne.s32.totalorder %s68, %s69
    %p80 = scmp.eq.s32.totalorder %s13, 0
    %p81 = por %p79, %p80
    %p82 = scmp.ne.s32.totalorder %s68, %s69
    %p83 = scmp.eq.s32.totalorder %s14, 1
    %p84 = por %p82, %p83
    %p86 = scmp.ne.s32.totalorder %s69, %s85
    %p87 = scmp.eq.s32.totalorder %s14, 0
    %p88 = por %p86, %p87
    %p89 = scmp.le.s32.totalorder 1, %s8
    %p90 = scmp.lt.s32.totalorder %s8, 3
    %p91 = pnand %p89, %p90
    %p92 = pneg %p91
    // Predicated region
    $region9: #{tpu_custom_call.1} parent=5 // pred_check
      _
    $region10: #{tpu_custom_call.1} parent=5 // pred_check_branch
      %94 = sbr.rel (%p91) target = $region12
    $region11: #{tpu_custom_call.1} parent=5 // pred_region
      %s95 = ssub.s32 %s8, 1
      // Predicated region
      $region13: #{tpu_custom_call.1} parent=11 // pred_check
        %p96 = pneg %p55
      $region14: #{tpu_custom_call.1} parent=11 // pred_check_branch
        %98 = sbr.rel (%p96) target = $region16
      $region15: #{tpu_custom_call.1} parent=11 // pred_region
        _
      $region16: #{tpu_custom_call.1} parent=11 // pred_fallthru
        _
    $region12: #{tpu_custom_call.1} parent=5 // pred_fallthru
      _
    %p99 = scmp.lt.s32.totalorder %s8, 2
    // Predicated region
    $region17: #{tpu_custom_call.1} parent=5 // pred_check
      %p100 = pneg %p99
    $region18: #{tpu_custom_call.1} parent=5 // pred_check_branch
      %102 = sbr.rel (%p100) target = $region20
    $region19: #{tpu_custom_call.1} parent=5 // pred_region
      // Predicated region
      $region21: #{tpu_custom_call.1} parent=19 // pred_check
        %p103 = pneg %p28
      $region22: #{tpu_custom_call.1} parent=19 // pred_check_branch
        %105 = sbr.rel (%p103) target = $region24
      $region23: #{tpu_custom_call.1} parent=19 // pred_region
        %s106 = smul.u32 16, %s8
        %p107 = scmp.lt.s32.totalorder %s106, 31
        %s108 = scalar_select %p107, %s106, 31
        %s109 = smul.addr %s108, 8
        %s110 = scalar_lea.vmem %s0, %s109
        %s111 = smul.u32 16, %s8
      $region24: #{tpu_custom_call.1} parent=19 // pred_fallthru
        _
    $region20: #{tpu_custom_call.1} parent=5 // pred_fallthru
      _
    %p112 = scmp.le.s32.totalorder 1, %s8
    %p113 = scmp.lt.s32.totalorder %s8, 3
    %p114 = pnand %p112, %p113
    %p115 = pneg %p114
    // Predicated region
    $region25: #{tpu_custom_call.1} parent=5 // pred_check
      _
    $region26: #{tpu_custom_call.1} parent=5 // pred_check_branch
      %117 = sbr.rel (%p114) target = $region28
    $region27: #{tpu_custom_call.1} parent=5 // pred_region
      %s118 = ssub.s32 %s8, 1
      %s119 = smul.u32 16, %s13
      %p120 = scmp.lt.s32.totalorder %s119, 31
      %s121 = scalar_select %p120, %s119, 31
      %s122 = smul.addr %s121, 8
      %s123 = scalar_lea.vmem %s0, %s122
      %p124 = pneg %p34
      %p125 = pneg %p31
      %p126 = pneg %p55
      %p127 = pneg %p52
      %p128 = pneg %p81
      %p129 = pneg %p78
      %s130 = smul.u32 16, %s13
      %p131 = scmp.lt.s32.totalorder %s130, 31
      %s132 = scalar_select %p131, %s130, 31
      %s133 = smul.addr %s132, 8
      %s134 = scalar_lea.vmem %s2, %s133
      %s135 = smul.u32 16, %s13
      %p136 = scmp.lt.s32.totalorder %s135, 31
      %s137 = scalar_select %p136, %s135, 31
      %s138 = smul.addr %s137, 8
      %s139 = scalar_lea.vmem %s0, %s138
      %s140 = smul.u32 16, %s13
      %s141 = smul.u32 16, %s13
      %p142 = scmp.lt.s32.totalorder %s141, 31
      %s143 = scalar_select %p142, %s141, 31
      %s144 = smul.addr %s143, 8
      %s145 = scalar_lea.vmem %s2, %s144
      %s146 = smul.u32 16, %s13
      %v147 = vld [vmem:[%s139] sm:$0xff]
      %v148 = vld [vmem:[%s139 + $0x8] sm:$0xff]
      %v149 = vld [vmem:[%s139 + $0x10] sm:$0xff]
      %v150 = vld [vmem:[%s139 + $0x18] sm:$0xff]
      %v151 = vld [vmem:[%s139 + $0x20] sm:$0xff]
      %v152 = vld [vmem:[%s139 + $0x28] sm:$0xff]
      %v153 = vld [vmem:[%s139 + $0x30] sm:$0xff]
      %v154 = vld [vmem:[%s139 + $0x38] sm:$0xff]
      %v155 = vld [vmem:[%s139 + $0x40] sm:$0xff]
      %v156 = vld [vmem:[%s139 + $0x48] sm:$0xff]
      %v157 = vld [vmem:[%s139 + $0x50] sm:$0xff]
      %v158 = vld [vmem:[%s139 + $0x58] sm:$0xff]
      %v159 = vld [vmem:[%s139 + $0x60] sm:$0xff]
      %v160 = vld [vmem:[%s139 + $0x68] sm:$0xff]
      %v161 = vld [vmem:[%s139 + $0x70] sm:$0xff]
      %v162 = vld [vmem:[%s139 + $0x78] sm:$0xff]
      %v163 = vlaneseq
      %v164 = vand.u32 %v163, 127
      %vm165 = vcmp.ge.s32.totalorder %v164, 0
      %vm166 = vcmp.lt.s32.totalorder %v164, 32
      %vm167 = vmand %vm165, %vm166
      %168 = vset.pattern.permute.xlu0 0
      %169 = vperm.xlu0 %168, %v147
      %v170 = vpop.permute.xlu0 %169
      %171 = vset.pattern.permute.xlu0 0
      %172 = vperm.xlu0 %171, %v148
      %v173 = vpop.permute.xlu0 %172
      %174 = vset.pattern.permute.xlu0 0
      %175 = vperm.xlu0 %174, %v149
      %v176 = vpop.permute.xlu0 %175
      %177 = vset.pattern.permute.xlu0 0
      %178 = vperm.xlu0 %177, %v150
      %v179 = vpop.permute.xlu0 %178
      %180 = vset.pattern.permute.xlu0 0
      %181 = vperm.xlu0 %180, %v151
      %v182 = vpop.permute.xlu0 %181
      %183 = vset.pattern.permute.xlu0 0
      %184 = vperm.xlu0 %183, %v152
      %v185 = vpop.permute.xlu0 %184
      %186 = vset.pattern.permute.xlu0 0
      %187 = vperm.xlu0 %186, %v153
      %v188 = vpop.permute.xlu0 %187
      %189 = vset.pattern.permute.xlu0 0
      %190 = vperm.xlu0 %189, %v154
      %v191 = vpop.permute.xlu0 %190
      %192 = vset.pattern.permute.xlu0 0
      %193 = vperm.xlu0 %192, %v155
      %v194 = vpop.permute.xlu0 %193
      %195 = vset.pattern.permute.xlu0 0
      %196 = vperm.xlu0 %195, %v156
      %v197 = vpop.permute.xlu0 %196
      %198 = vset.pattern.permute.xlu0 0
      %199 = vperm.xlu0 %198, %v157
      %v200 = vpop.permute.xlu0 %199
      %201 = vset.pattern.permute.xlu0 0
      %202 = vperm.xlu0 %201, %v158
      %v203 = vpop.permute.xlu0 %202
      %204 = vset.pattern.permute.xlu0 0
      %205 = vperm.xlu0 %204, %v159
      %v206 = vpop.permute.xlu0 %205
      %207 = vset.pattern.permute.xlu0 0
      %208 = vperm.xlu0 %207, %v160
      %v209 = vpop.permute.xlu0 %208
      %210 = vset.pattern.permute.xlu0 0
      %211 = vperm.xlu0 %210, %v161
      %v212 = vpop.permute.xlu0 %211
      %213 = vset.pattern.permute.xlu0 0
      %214 = vperm.xlu0 %213, %v162
      %v215 = vpop.permute.xlu0 %214
      %v216 = vsel %vm167, %v170, 0
      %v217 = vsel %vm167, %v173, 0
      %v218 = vsel %vm167, %v176, 0
      %v219 = vsel %vm167, %v179, 0
      %v220 = vsel %vm167, %v182, 0
      %v221 = vsel %vm167, %v185, 0
      %v222 = vsel %vm167, %v188, 0
      %v223 = vsel %vm167, %v191, 0
      %v224 = vsel %vm167, %v194, 0
      %v225 = vsel %vm167, %v197, 0
      %v226 = vsel %vm167, %v200, 0
      %v227 = vsel %vm167, %v203, 0
      %v228 = vsel %vm167, %v206, 0
      %v229 = vsel %vm167, %v209, 0
      %v230 = vsel %vm167, %v212, 0
      %v231 = vsel %vm167, %v215, 0
      %vm232 = vcmp.ge.s32.totalorder %v164, 32
      %vm233 = vcmp.lt.s32.totalorder %v164, 64
      %vm234 = vmand %vm232, %vm233
      %235 = vset.pattern.permute.xlu0 1
      %236 = vperm.xlu0 %235, %v147
      %v237 = vpop.permute.xlu0 %236
      %238 = vset.pattern.permute.xlu0 1
      %239 = vperm.xlu0 %238, %v148
      %v240 = vpop.permute.xlu0 %239
      %241 = vset.pattern.permute.xlu0 1
      %242 = vperm.xlu0 %241, %v149
      %v243 = vpop.permute.xlu0 %242
      %244 = vset.pattern.permute.xlu0 1
      %245 = vperm.xlu0 %244, %v150
      %v246 = vpop.permute.xlu0 %245
      %247 = vset.pattern.permute.xlu0 1
      %248 = vperm.xlu0 %247, %v151
      %v249 = vpop.permute.xlu0 %248
      %250 = vset.pattern.permute.xlu0 1
      %251 = vperm.xlu0 %250, %v152
      %v252 = vpop.permute.xlu0 %251
      %253 = vset.pattern.permute.xlu0 1
      %254 = vperm.xlu0 %253, %v153
      %v255 = vpop.permute.xlu0 %254
      %256 = vset.pattern.permute.xlu0 1
      %257 = vperm.xlu0 %256, %v154
      %v258 = vpop.permute.xlu0 %257
      %259 = vset.pattern.permute.xlu0 1
      %260 = vperm.xlu0 %259, %v155
      %v261 = vpop.permute.xlu0 %260
      %262 = vset.pattern.permute.xlu0 1
      %263 = vperm.xlu0 %262, %v156
      %v264 = vpop.permute.xlu0 %263
      %265 = vset.pattern.permute.xlu0 1
      %266 = vperm.xlu0 %265, %v157
      %v267 = vpop.permute.xlu0 %266
      %268 = vset.pattern.permute.xlu0 1
      %269 = vperm.xlu0 %268, %v158
      %v270 = vpop.permute.xlu0 %269
      %271 = vset.pattern.permute.xlu0 1
      %272 = vperm.xlu0 %271, %v159
      %v273 = vpop.permute.xlu0 %272
      %274 = vset.pattern.permute.xlu0 1
      %275 = vperm.xlu0 %274, %v160
      %v276 = vpop.permute.xlu0 %275
      %277 = vset.pattern.permute.xlu0 1
      %278 = vperm.xlu0 %277, %v161
      %v279 = vpop.permute.xlu0 %278
      %280 = vset.pattern.permute.xlu0 1
      %281 = vperm.xlu0 %280, %v162
      %v282 = vpop.permute.xlu0 %281
      %v283 = vsel %vm234, %v237, %v216
      %v284 = vsel %vm234, %v240, %v217
      %v285 = vsel %vm234, %v243, %v218
      %v286 = vsel %vm234, %v246, %v219
      %v287 = vsel %vm234, %v249, %v220
      %v288 = vsel %vm234, %v252, %v221
      %v289 = vsel %vm234, %v255, %v222
      %v290 = vsel %vm234, %v258, %v223
      %v291 = vsel %vm234, %v261, %v224
      %v292 = vsel %vm234, %v264, %v225
      %v293 = vsel %vm234, %v267, %v226
      %v294 = vsel %vm234, %v270, %v227
      %v295 = vsel %vm234, %v273, %v228
      %v296 = vsel %vm234, %v276, %v229
      %v297 = vsel %vm234, %v279, %v230
      %v298 = vsel %vm234, %v282, %v231
      %vm299 = vcmp.ge.s32.totalorder %v164, 64
      %vm300 = vcmp.lt.s32.totalorder %v164, 96
      %vm301 = vmand %vm299, %vm300
      %302 = vset.pattern.permute.xlu0 2
      %303 = vperm.xlu0 %302, %v147
      %v304 = vpop.permute.xlu0 %303
      %305 = vset.pattern.permute.xlu0 2
      %306 = vperm.xlu0 %305, %v148
      %v307 = vpop.permute.xlu0 %306
      %308 = vset.pattern.permute.xlu0 2
      %309 = vperm.xlu0 %308, %v149
      %v310 = vpop.permute.xlu0 %309
      %311 = vset.pattern.permute.xlu0 2
      %312 = vperm.xlu0 %311, %v150
      %v313 = vpop.permute.xlu0 %312
      %314 = vset.pattern.permute.xlu0 2
      %315 = vperm.xlu0 %314, %v151
      %v316 = vpop.permute.xlu0 %315
      %317 = vset.pattern.permute.xlu0 2
      %318 = vperm.xlu0 %317, %v152
      %v319 = vpop.permute.xlu0 %318
      %320 = vset.pattern.permute.xlu0 2
      %321 = vperm.xlu0 %320, %v153
      %v322 = vpop.permute.xlu0 %321
      %323 = vset.pattern.permute.xlu0 2
      %324 = vperm.xlu0 %323, %v154
      %v325 = vpop.permute.xlu0 %324
      %326 = vset.pattern.permute.xlu0 2
      %327 = vperm.xlu0 %326, %v155
      %v328 = vpop.permute.xlu0 %327
      %329 = vset.pattern.permute.xlu0 2
      %330 = vperm.xlu0 %329, %v156
      %v331 = vpop.permute.xlu0 %330
      %332 = vset.pattern.permute.xlu0 2
      %333 = vperm.xlu0 %332, %v157
      %v334 = vpop.permute.xlu0 %333
      %335 = vset.pattern.permute.xlu0 2
      %336 = vperm.xlu0 %335, %v158
      %v337 = vpop.permute.xlu0 %336
      %338 = vset.pattern.permute.xlu0 2
      %339 = vperm.xlu0 %338, %v159
      %v340 = vpop.permute.xlu0 %339
      %341 = vset.pattern.permute.xlu0 2
      %342 = vperm.xlu0 %341, %v160
      %v343 = vpop.permute.xlu0 %342
      %344 = vset.pattern.permute.xlu0 2
      %345 = vperm.xlu0 %344, %v161
      %v346 = vpop.permute.xlu0 %345
      %347 = vset.pattern.permute.xlu0 2
      %348 = vperm.xlu0 %347, %v162
      %v349 = vpop.permute.xlu0 %348
      %v350 = vsel %vm301, %v304, %v283
      %v351 = vsel %vm301, %v307, %v284
      %v352 = vsel %vm301, %v310, %v285
      %v353 = vsel %vm301, %v313, %v286
      %v354 = vsel %vm301, %v316, %v287
      %v355 = vsel %vm301, %v319, %v288
      %v356 = vsel %vm301, %v322, %v289
      %v357 = vsel %vm301, %v325, %v290
      %v358 = vsel %vm301, %v328, %v291
      %v359 = vsel %vm301, %v331, %v292
      %v360 = vsel %vm301, %v334, %v293
      %v361 = vsel %vm301, %v337, %v294
      %v362 = vsel %vm301, %v340, %v295
      %v363 = vsel %vm301, %v343, %v296
      %v364 = vsel %vm301, %v346, %v297
      %v365 = vsel %vm301, %v349, %v298
      %v366 = vld [vmem:[%s1] sm:$0x1]
      %vm367 = vcmp.eq.s32.totalorder %v350, 0
      %vm368 = vcmp.eq.s32.totalorder %v351, 0
      %vm369 = vcmp.eq.s32.totalorder %v352, 0
      %vm370 = vcmp.eq.s32.totalorder %v353, 0
      %vm371 = vcmp.eq.s32.totalorder %v354, 0
      %vm372 = vcmp.eq.s32.totalorder %v355, 0
      %vm373 = vcmp.eq.s32.totalorder %v356, 0
      %vm374 = vcmp.eq.s32.totalorder %v357, 0
      %vm375 = vcmp.eq.s32.totalorder %v358, 0
      %vm376 = vcmp.eq.s32.totalorder %v359, 0
      %vm377 = vcmp.eq.s32.totalorder %v360, 0
      %vm378 = vcmp.eq.s32.totalorder %v361, 0
      %vm379 = vcmp.eq.s32.totalorder %v362, 0
      %vm380 = vcmp.eq.s32.totalorder %v363, 0
      %vm381 = vcmp.eq.s32.totalorder %v364, 0
      %vm382 = vcmp.eq.s32.totalorder %v365, 0
      %v383 = vperm.slane %v366, 0
      %v384 = vsel %vm367, %v383, 0.0
      %v385 = vsel %vm368, %v383, 0.0
      %v386 = vsel %vm369, %v383, 0.0
      %v387 = vsel %vm370, %v383, 0.0
      %v388 = vsel %vm371, %v383, 0.0
      %v389 = vsel %vm372, %v383, 0.0
      %v390 = vsel %vm373, %v383, 0.0
      %v391 = vsel %vm374, %v383, 0.0
      %v392 = vsel %vm375, %v383, 0.0
      %v393 = vsel %vm376, %v383, 0.0
      %v394 = vsel %vm377, %v383, 0.0
      %v395 = vsel %vm378, %v383, 0.0
      %v396 = vsel %vm379, %v383, 0.0
      %v397 = vsel %vm380, %v383, 0.0
      %v398 = vsel %vm381, %v383, 0.0
      %v399 = vsel %vm382, %v383, 0.0
      %v400 = vld [vmem:[%s1 + $0x1] sm:$0x1]
      %vm401 = vcmp.eq.s32.totalorder %v350, 1
      %vm402 = vcmp.eq.s32.totalorder %v351, 1
      %vm403 = vcmp.eq.s32.totalorder %v352, 1
      %vm404 = vcmp.eq.s32.totalorder %v353, 1
      %vm405 = vcmp.eq.s32.totalorder %v354, 1
      %vm406 = vcmp.eq.s32.totalorder %v355, 1
      %vm407 = vcmp.eq.s32.totalorder %v356, 1
      %vm408 = vcmp.eq.s32.totalorder %v357, 1
      %vm409 = vcmp.eq.s32.totalorder %v358, 1
      %vm410 = vcmp.eq.s32.totalorder %v359, 1
      %vm411 = vcmp.eq.s32.totalorder %v360, 1
      %vm412 = vcmp.eq.s32.totalorder %v361, 1
      %vm413 = vcmp.eq.s32.totalorder %v362, 1
      %vm414 = vcmp.eq.s32.totalorder %v363, 1
      %vm415 = vcmp.eq.s32.totalorder %v364, 1
      %vm416 = vcmp.eq.s32.totalorder %v365, 1
      %v417 = vperm.slane %v400, 0
      %v418 = vsel %vm401, %v417, %v384
      %v419 = vsel %vm402, %v417, %v385
      %v420 = vsel %vm403, %v417, %v386
      %v421 = vsel %vm404, %v417, %v387
      %v422 = vsel %vm405, %v417, %v388
      %v423 = vsel %vm406, %v417, %v389
      %v424 = vsel %vm407, %v417, %v390
      %v425 = vsel %vm408, %v417, %v391
      %v426 = vsel %vm409, %v417, %v392
      %v427 = vsel %vm410, %v417, %v393
      %v428 = vsel %vm411, %v417, %v394
      %v429 = vsel %vm412, %v417, %v395
      %v430 = vsel %vm413, %v417, %v396
      %v431 = vsel %vm414, %v417, %v397
      %v432 = vsel %vm415, %v417, %v398
      %v433 = vsel %vm416, %v417, %v399
      %v434 = vld [vmem:[%s1 + $0x2] sm:$0x1]
      %vm435 = vcmp.eq.s32.totalorder %v350, 2
      %vm436 = vcmp.eq.s32.totalorder %v351, 2
      %vm437 = vcmp.eq.s32.totalorder %v352, 2
      %vm438 = vcmp.eq.s32.totalorder %v353, 2
      %vm439 = vcmp.eq.s32.totalorder %v354, 2
      %vm440 = vcmp.eq.s32.totalorder %v355, 2
      %vm441 = vcmp.eq.s32.totalorder %v356, 2
      %vm442 = vcmp.eq.s32.totalorder %v357, 2
      %vm443 = vcmp.eq.s32.totalorder %v358, 2
      %vm444 = vcmp.eq.s32.totalorder %v359, 2
      %vm445 = vcmp.eq.s32.totalorder %v360, 2
      %vm446 = vcmp.eq.s32.totalorder %v361, 2
      %vm447 = vcmp.eq.s32.totalorder %v362, 2
      %vm448 = vcmp.eq.s32.totalorder %v363, 2
      %vm449 = vcmp.eq.s32.totalorder %v364, 2
      %vm450 = vcmp.eq.s32.totalorder %v365, 2
      %v451 = vperm.slane %v434, 0
      %v452 = vsel %vm435, %v451, %v418
      %v453 = vsel %vm436, %v451, %v419
      %v454 = vsel %vm437, %v451, %v420
      %v455 = vsel %vm438, %v451, %v421
      %v456 = vsel %vm439, %v451, %v422
      %v457 = vsel %vm440, %v451, %v423
      %v458 = vsel %vm441, %v451, %v424
      %v459 = vsel %vm442, %v451, %v425
      %v460 = vsel %vm443, %v451, %v426
      %v461 = vsel %vm444, %v451, %v427
      %v462 = vsel %vm445, %v451, %v428
      %v463 = vsel %vm446, %v451, %v429
      %v464 = vsel %vm447, %v451, %v430
      %v465 = vsel %vm448, %v451, %v431
      %v466 = vsel %vm449, %v451, %v432
      %v467 = vsel %vm450, %v451, %v433
      %v468 = vld [vmem:[%s1 + $0x3] sm:$0x1]
      %vm469 = vcmp.eq.s32.totalorder %v350, 3
      %vm470 = vcmp.eq.s32.totalorder %v351, 3
      %vm471 = vcmp.eq.s32.totalorder %v352, 3
      %vm472 = vcmp.eq.s32.totalorder %v353, 3
      %vm473 = vcmp.eq.s32.totalorder %v354, 3
      %vm474 = vcmp.eq.s32.totalorder %v355, 3
      %vm475 = vcmp.eq.s32.totalorder %v356, 3
      %vm476 = vcmp.eq.s32.totalorder %v357, 3
      %vm477 = vcmp.eq.s32.totalorder %v358, 3
      %vm478 = vcmp.eq.s32.totalorder %v359, 3
      %vm479 = vcmp.eq.s32.totalorder %v360, 3
      %vm480 = vcmp.eq.s32.totalorder %v361, 3
      %vm481 = vcmp.eq.s32.totalorder %v362, 3
      %vm482 = vcmp.eq.s32.totalorder %v363, 3
      %vm483 = vcmp.eq.s32.totalorder %v364, 3
      %vm484 = vcmp.eq.s32.totalorder %v365, 3
      %v485 = vperm.slane %v468, 0
      %v486 = vsel %vm469, %v485, %v452
      %v487 = vsel %vm470, %v485, %v453
      %v488 = vsel %vm471, %v485, %v454
      %v489 = vsel %vm472, %v485, %v455
      %v490 = vsel %vm473, %v485, %v456
      %v491 = vsel %vm474, %v485, %v457
      %v492 = vsel %vm475, %v485, %v458
      %v493 = vsel %vm476, %v485, %v459
      %v494 = vsel %vm477, %v485, %v460
      %v495 = vsel %vm478, %v485, %v461
      %v496 = vsel %vm479, %v485, %v462
      %v497 = vsel %vm480, %v485, %v463
      %v498 = vsel %vm481, %v485, %v464
      %v499 = vsel %vm482, %v485, %v465
      %v500 = vsel %vm483, %v485, %v466
      %v501 = vsel %vm484, %v485, %v467
      %v502 = vld [vmem:[%s1 + $0x4] sm:$0x1]
      %vm503 = vcmp.eq.s32.totalorder %v350, 4
      %vm504 = vcmp.eq.s32.totalorder %v351, 4
      %vm505 = vcmp.eq.s32.totalorder %v352, 4
      %vm506 = vcmp.eq.s32.totalorder %v353, 4
      %vm507 = vcmp.eq.s32.totalorder %v354, 4
      %vm508 = vcmp.eq.s32.totalorder %v355, 4
      %vm509 = vcmp.eq.s32.totalorder %v356, 4
      %vm510 = vcmp.eq.s32.totalorder %v357, 4
      %vm511 = vcmp.eq.s32.totalorder %v358, 4
      %vm512 = vcmp.eq.s32.totalorder %v359, 4
      %vm513 = vcmp.eq.s32.totalorder %v360, 4
      %vm514 = vcmp.eq.s32.totalorder %v361, 4
      %vm515 = vcmp.eq.s32.totalorder %v362, 4
      %vm516 = vcmp.eq.s32.totalorder %v363, 4
      %vm517 = vcmp.eq.s32.totalorder %v364, 4
      %vm518 = vcmp.eq.s32.totalorder %v365, 4
      %v519 = vperm.slane %v502, 0
      %v520 = vsel %vm503, %v519, %v486
      %v521 = vsel %vm504, %v519, %v487
      %v522 = vsel %vm505, %v519, %v488
      %v523 = vsel %vm506, %v519, %v489
      %v524 = vsel %vm507, %v519, %v490
      %v525 = vsel %vm508, %v519, %v491
      %v526 = vsel %vm509, %v519, %v492
      %v527 = vsel %vm510, %v519, %v493
      %v528 = vsel %vm511, %v519, %v494
      %v529 = vsel %vm512, %v519, %v495
      %v530 = vsel %vm513, %v519, %v496
      %v531 = vsel %vm514, %v519, %v497
      %v532 = vsel %vm515, %v519, %v498
      %v533 = vsel %vm516, %v519, %v499
      %v534 = vsel %vm517, %v519, %v500
      %v535 = vsel %vm518, %v519, %v501
      %v536 = vld [vmem:[%s1 + $0x5] sm:$0x1]
      %vm537 = vcmp.eq.s32.totalorder %v350, 5
      %vm538 = vcmp.eq.s32.totalorder %v351, 5
      %vm539 = vcmp.eq.s32.totalorder %v352, 5
      %vm540 = vcmp.eq.s32.totalorder %v353, 5
      %vm541 = vcmp.eq.s32.totalorder %v354, 5
      %vm542 = vcmp.eq.s32.totalorder %v355, 5
      %vm543 = vcmp.eq.s32.totalorder %v356, 5
      %vm544 = vcmp.eq.s32.totalorder %v357, 5
      %vm545 = vcmp.eq.s32.totalorder %v358, 5
      %vm546 = vcmp.eq.s32.totalorder %v359, 5
      %vm547 = vcmp.eq.s32.totalorder %v360, 5
      %vm548 = vcmp.eq.s32.totalorder %v361, 5
      %vm549 = vcmp.eq.s32.totalorder %v362, 5
      %vm550 = vcmp.eq.s32.totalorder %v363, 5
      %vm551 = vcmp.eq.s32.totalorder %v364, 5
      %vm552 = vcmp.eq.s32.totalorder %v365, 5
      %v553 = vperm.slane %v536, 0
      %v554 = vsel %vm537, %v553, %v520
      %v555 = vsel %vm538, %v553, %v521
      %v556 = vsel %vm539, %v553, %v522
      %v557 = vsel %vm540, %v553, %v523
      %v558 = vsel %vm541, %v553, %v524
      %v559 = vsel %vm542, %v553, %v525
      %v560 = vsel %vm543, %v553, %v526
      %v561 = vsel %vm544, %v553, %v527
      %v562 = vsel %vm545, %v553, %v528
      %v563 = vsel %vm546, %v553, %v529
      %v564 = vsel %vm547, %v553, %v530
      %v565 = vsel %vm548, %v553, %v531
      %v566 = vsel %vm549, %v553, %v532
      %v567 = vsel %vm550, %v553, %v533
      %v568 = vsel %vm551, %v553, %v534
      %v569 = vsel %vm552, %v553, %v535
      %v570 = vld [vmem:[%s1 + $0x6] sm:$0x1]
      %vm571 = vcmp.eq.s32.totalorder %v350, 6
      %vm572 = vcmp.eq.s32.totalorder %v351, 6
      %vm573 = vcmp.eq.s32.totalorder %v352, 6
      %vm574 = vcmp.eq.s32.totalorder %v353, 6
      %vm575 = vcmp.eq.s32.totalorder %v354, 6
      %vm576 = vcmp.eq.s32.totalorder %v355, 6
      %vm577 = vcmp.eq.s32.totalorder %v356, 6
      %vm578 = vcmp.eq.s32.totalorder %v357, 6
      %vm579 = vcmp.eq.s32.totalorder %v358, 6
      %vm580 = vcmp.eq.s32.totalorder %v359, 6
      %vm581 = vcmp.eq.s32.totalorder %v360, 6
      %vm582 = vcmp.eq.s32.totalorder %v361, 6
      %vm583 = vcmp.eq.s32.totalorder %v362, 6
      %vm584 = vcmp.eq.s32.totalorder %v363, 6
      %vm585 = vcmp.eq.s32.totalorder %v364, 6
      %vm586 = vcmp.eq.s32.totalorder %v365, 6
      %v587 = vperm.slane %v570, 0
      %v588 = vsel %vm571, %v587, %v554
      %v589 = vsel %vm572, %v587, %v555
      %v590 = vsel %vm573, %v587, %v556
      %v591 = vsel %vm574, %v587, %v557
      %v592 = vsel %vm575, %v587, %v558
      %v593 = vsel %vm576, %v587, %v559
      %v594 = vsel %vm577, %v587, %v560
      %v595 = vsel %vm578, %v587, %v561
      %v596 = vsel %vm579, %v587, %v562
      %v597 = vsel %vm580, %v587, %v563
      %v598 = vsel %vm581, %v587, %v564
      %v599 = vsel %vm582, %v587, %v565
      %v600 = vsel %vm583, %v587, %v566
      %v601 = vsel %vm584, %v587, %v567
      %v602 = vsel %vm585, %v587, %v568
      %v603 = vsel %vm586, %v587, %v569
      %v604 = vld [vmem:[%s1 + $0x7] sm:$0x1]
      %vm605 = vcmp.eq.s32.totalorder %v350, 7
      %vm606 = vcmp.eq.s32.totalorder %v351, 7
      %vm607 = vcmp.eq.s32.totalorder %v352, 7
      %vm608 = vcmp.eq.s32.totalorder %v353, 7
      %vm609 = vcmp.eq.s32.totalorder %v354, 7
      %vm610 = vcmp.eq.s32.totalorder %v355, 7
      %vm611 = vcmp.eq.s32.totalorder %v356, 7
      %vm612 = vcmp.eq.s32.totalorder %v357, 7
      %vm613 = vcmp.eq.s32.totalorder %v358, 7
      %vm614 = vcmp.eq.s32.totalorder %v359, 7
      %vm615 = vcmp.eq.s32.totalorder %v360, 7
      %vm616 = vcmp.eq.s32.totalorder %v361, 7
      %vm617 = vcmp.eq.s32.totalorder %v362, 7
      %vm618 = vcmp.eq.s32.totalorder %v363, 7
      %vm619 = vcmp.eq.s32.totalorder %v364, 7
      %vm620 = vcmp.eq.s32.totalorder %v365, 7
      %v621 = vperm.slane %v604, 0
      %v622 = vsel %vm605, %v621, %v588
      %v623 = vsel %vm606, %v621, %v589
      %v624 = vsel %vm607, %v621, %v590
      %v625 = vsel %vm608, %v621, %v591
      %v626 = vsel %vm609, %v621, %v592
      %v627 = vsel %vm610, %v621, %v593
      %v628 = vsel %vm611, %v621, %v594
      %v629 = vsel %vm612, %v621, %v595
      %v630 = vsel %vm613, %v621, %v596
      %v631 = vsel %vm614, %v621, %v597
      %v632 = vsel %vm615, %v621, %v598
      %v633 = vsel %vm616, %v621, %v599
      %v634 = vsel %vm617, %v621, %v600
      %v635 = vsel %vm618, %v621, %v601
      %v636 = vsel %vm619, %v621, %v602
      %v637 = vsel %vm620, %v621, %v603
      %v638 = vld [vmem:[%s1 + $0x8] sm:$0x1]
      %vm639 = vcmp.eq.s32.totalorder %v350, 8
      %vm640 = vcmp.eq.s32.totalorder %v351, 8
      %vm641 = vcmp.eq.s32.totalorder %v352, 8
      %vm642 = vcmp.eq.s32.totalorder %v353, 8
      %vm643 = vcmp.eq.s32.totalorder %v354, 8
      %vm644 = vcmp.eq.s32.totalorder %v355, 8
      %vm645 = vcmp.eq.s32.totalorder %v356, 8
      %vm646 = vcmp.eq.s32.totalorder %v357, 8
      %vm647 = vcmp.eq.s32.totalorder %v358, 8
      %vm648 = vcmp.eq.s32.totalorder %v359, 8
      %vm649 = vcmp.eq.s32.totalorder %v360, 8
      %vm650 = vcmp.eq.s32.totalorder %v361, 8
      %vm651 = vcmp.eq.s32.totalorder %v362, 8
      %vm652 = vcmp.eq.s32.totalorder %v363, 8
      %vm653 = vcmp.eq.s32.totalorder %v364, 8
      %vm654 = vcmp.eq.s32.totalorder %v365, 8
      %v655 = vperm.slane %v638, 0
      %v656 = vsel %vm639, %v655, %v622
      %v657 = vsel %vm640, %v655, %v623
      %v658 = vsel %vm641, %v655, %v624
      %v659 = vsel %vm642, %v655, %v625
      %v660 = vsel %vm643, %v655, %v626
      %v661 = vsel %vm644, %v655, %v627
      %v662 = vsel %vm645, %v655, %v628
      %v663 = vsel %vm646, %v655, %v629
      %v664 = vsel %vm647, %v655, %v630
      %v665 = vsel %vm648, %v655, %v631
      %v666 = vsel %vm649, %v655, %v632
      %v667 = vsel %vm650, %v655, %v633
      %v668 = vsel %vm651, %v655, %v634
      %v669 = vsel %vm652, %v655, %v635
      %v670 = vsel %vm653, %v655, %v636
      %v671 = vsel %vm654, %v655, %v637
      %v672 = vld [vmem:[%s1 + $0x9] sm:$0x1]
      %vm673 = vcmp.eq.s32.totalorder %v350, 9
      %vm674 = vcmp.eq.s32.totalorder %v351, 9
      %vm675 = vcmp.eq.s32.totalorder %v352, 9
      %vm676 = vcmp.eq.s32.totalorder %v353, 9
      %vm677 = vcmp.eq.s32.totalorder %v354, 9
      %vm678 = vcmp.eq.s32.totalorder %v355, 9
      %vm679 = vcmp.eq.s32.totalorder %v356, 9
      %vm680 = vcmp.eq.s32.totalorder %v357, 9
      %vm681 = vcmp.eq.s32.totalorder %v358, 9
      %vm682 = vcmp.eq.s32.totalorder %v359, 9
      %vm683 = vcmp.eq.s32.totalorder %v360, 9
      %vm684 = vcmp.eq.s32.totalorder %v361, 9
      %vm685 = vcmp.eq.s32.totalorder %v362, 9
      %vm686 = vcmp.eq.s32.totalorder %v363, 9
      %vm687 = vcmp.eq.s32.totalorder %v364, 9
      %vm688 = vcmp.eq.s32.totalorder %v365, 9
      %v689 = vperm.slane %v672, 0
      %v690 = vsel %vm673, %v689, %v656
      %v691 = vsel %vm674, %v689, %v657
      %v692 = vsel %vm675, %v689, %v658
      %v693 = vsel %vm676, %v689, %v659
      %v694 = vsel %vm677, %v689, %v660
      %v695 = vsel %vm678, %v689, %v661
      %v696 = vsel %vm679, %v689, %v662
      %v697 = vsel %vm680, %v689, %v663
      %v698 = vsel %vm681, %v689, %v664
      %v699 = vsel %vm682, %v689, %v665
      %v700 = vsel %vm683, %v689, %v666
      %v701 = vsel %vm684, %v689, %v667
      %v702 = vsel %vm685, %v689, %v668
      %v703 = vsel %vm686, %v689, %v669
      %v704 = vsel %vm687, %v689, %v670
      %v705 = vsel %vm688, %v689, %v671
      %vm706 = vcmask 785408
      %707 = vst.msk [vmem:[%s145] sm:$0xff] %vm706, %v690
      %708 = vst.msk [vmem:[%s145 + $0x8] sm:$0xff] %vm706, %v691
      %709 = vst.msk [vmem:[%s145 + $0x10] sm:$0xff] %vm706, %v692
      %710 = vst.msk [vmem:[%s145 + $0x18] sm:$0xff] %vm706, %v693
      %711 = vst.msk [vmem:[%s145 + $0x20] sm:$0xff] %vm706, %v694
      %712 = vst.msk [vmem:[%s145 + $0x28] sm:$0xff] %vm706, %v695
      %713 = vst.msk [vmem:[%s145 + $0x30] sm:$0xff] %vm706, %v696
      %714 = vst.msk [vmem:[%s145 + $0x38] sm:$0xff] %vm706, %v697
      %715 = vst.msk [vmem:[%s145 + $0x40] sm:$0xff] %vm706, %v698
      %716 = vst.msk [vmem:[%s145 + $0x48] sm:$0xff] %vm706, %v699
      %717 = vst.msk [vmem:[%s145 + $0x50] sm:$0xff] %vm706, %v700
      %718 = vst.msk [vmem:[%s145 + $0x58] sm:$0xff] %vm706, %v701
      %719 = vst.msk [vmem:[%s145 + $0x60] sm:$0xff] %vm706, %v702
      %720 = vst.msk [vmem:[%s145 + $0x68] sm:$0xff] %vm706, %v703
      %721 = vst.msk [vmem:[%s145 + $0x70] sm:$0xff] %vm706, %v704
      %722 = vst.msk [vmem:[%s145 + $0x78] sm:$0xff] %vm706, %v705
      %s723 = smul.u32 16, %s13
      %p724 = scmp.lt.s32.totalorder %s723, 31
      %s725 = scalar_select %p724, %s723, 31
      %s726 = smul.addr %s725, 8
      %s727 = scalar_lea.vmem %s2, %s726
      // Predicated region
      $region29: #{tpu_custom_call.1} parent=27 // pred_check
        %p728 = pneg %p78
      $region30: #{tpu_custom_call.1} parent=27 // pred_check_branch
        %730 = sbr.rel (%p728) target = $region32
      $region31: #{tpu_custom_call.1} parent=27 // pred_region
        %s731 = smul.u32 16, %s13
      $region32: #{tpu_custom_call.1} parent=27 // pred_fallthru
        _
    $region28: #{tpu_custom_call.1} parent=5 // pred_fallthru
      _
    %p732 = scmp.le.s32.totalorder 2, %s8
    // Predicated region
    $region33: #{tpu_custom_call.1} parent=5 // pred_check
      %p733 = pneg %p732
    $region34: #{tpu_custom_call.1} parent=5 // pred_check_branch
      %735 = sbr.rel (%p733) target = $region36
    $region35: #{tpu_custom_call.1} parent=5 // pred_region
      %s736 = ssub.s32 %s8, 2
      // Predicated region
      $region37: #{tpu_custom_call.1} parent=35 // pred_check
        %p737 = pneg %p84
      $region38: #{tpu_custom_call.1} parent=35 // pred_check_branch
        %739 = sbr.rel (%p737) target = $region40
      $region39: #{tpu_custom_call.1} parent=35 // pred_region
        %s740 = smul.u32 16, %s14
        %p741 = scmp.lt.s32.totalorder %s740, 31
        %s742 = scalar_select %p741, %s740, 31
        %s743 = smul.addr %s742, 8
        %s744 = scalar_lea.vmem %s2, %s743
      $region40: #{tpu_custom_call.1} parent=35 // pred_fallthru
        _
    $region36: #{tpu_custom_call.1} parent=5 // pred_fallthru
      _
  $region6: #{tpu_custom_call.1} parent=0 // loop_footer
    %s12 = sadd.s32 1, %s8
  $region7: #{tpu_custom_call.1} parent=0 // loop_footer_branch
    %7 = sbr.rel target = $region3
  $region8: #{tpu_custom_call.1} parent=0 // loop_exit
    _

</llo_original>
